<compile_context>
chip_gen: v7x
topology: tpu7x:2x2x1
jax: 0.10.0
libtpu: 0.0.40
codegen_flags: <defaults>
</compile_context>

<pallas_src>
import functools
import math

import numpy as np
import jax
import jax.numpy as jnp
from jax.experimental import pallas as pl
from jax.experimental.pallas import tpu as pltpu


def _round_up(x, m):
    return (x + m - 1) // m * m


# ----------------------------------------------------------------------------
# Fused kernel: encoder MLP + decoder MLP + block-diagonal packed heads
# ----------------------------------------------------------------------------
def _vae_fused_kernel(n_enc, n_dec, P, a_ref, w_ref, b_ref, o_ref):
    """Fully fused (conditional) VAE forward.

    a_ref : [B, P]  f32  lane-packed input: y at cols [0:dy], x at cols [dy:dy+dx]
    w_ref : [(n_enc + n_dec + 2) * P, P]  bf16  one P-row block per layer; the last two
            blocks hold the block-diagonal head (enc head -> cols 0:2L, dec head -> 2L:4L)
    b_ref : [NB, P] f32  one row of (zero-padded) bias per layer, last row = head bias
    o_ref : [B, P]  f32  cols 0:4L = [mu_phi | log_var_phi | mu_theta | log_var_theta]
    """
    a = a_ref[...].astype(jnp.bfloat16)       # single f32->bf16 cast, reused by enc + dec

    def layer(h, blk):
        w = w_ref[blk * P:(blk + 1) * P, :]                       # static, tile-aligned slice
        z = jnp.dot(h, w, preferred_element_type=jnp.float32) + b_ref[blk:blk + 1, :]
        return jnp.tanh(z).astype(jnp.bfloat16)

    h_enc = a
    for i in range(n_enc):
        h_enc = layer(h_enc, i)

    h_dec = a
    for i in range(n_dec):
        h_dec = layer(h_dec, n_enc + i)

    # Block-diagonal fused head, split along K into the two P-row blocks
    # (mathematically identical to concat([h_enc, h_dec]) @ blockdiag(W_e, W_d)).
    hb = n_enc + n_dec
    w_head_e = w_ref[hb * P:(hb + 1) * P, :]
    w_head_d = w_ref[(hb + 1) * P:(hb + 2) * P, :]
    heads = (jnp.dot(h_enc, w_head_e, preferred_element_type=jnp.float32)
             + jnp.dot(h_dec, w_head_d, preferred_element_type=jnp.float32)
             + b_ref[hb:hb + 1, :])
    o_ref[...] = heads                          # ONE lane-dense [B, 128] store


# ----------------------------------------------------------------------------
# Model: deterministic kaiming_normal_ weights, zero biases (matches init_parameters)
# ----------------------------------------------------------------------------
class VAEPallas:
    def __init__(self, encoder_layer_sizes, decoder_layer_sizes, latent_size,
                 batch_size, conditional=False, num_labels=0, key=None):
        if conditional:
            assert num_labels > 0
        assert isinstance(encoder_layer_sizes, list)
        assert isinstance(latent_size, int)
        self.latent_size = latent_size
        self.conditional = conditional
        self.num_labels = num_labels

        enc_sizes = list(encoder_layer_sizes)
        if conditional:
            enc_sizes[0] += num_labels
        dec_sizes = list(decoder_layer_sizes)
        self.n_enc = len(enc_sizes) - 1
        self.n_dec = len(dec_sizes) - 1
        self.dy = encoder_layer_sizes[0]        # raw y width (pre-concat)
        self.dx = dec_sizes[0]                  # x width (decoder input / num_labels)

        # Lane/tile padding for the packed slabs.
        all_dims = enc_sizes + dec_sizes + [4 * latent_size, self.dy + self.dx]
        self.P = _round_up(max(all_dims + [128]), 128)
        P = self.P
        assert self.dy + self.dx <= P and 4 * latent_size <= P

        # ---- per-layer weights (f32, kept for the pure-JAX reference) ----
        def kaiming(k, in_s, out_s):
            # PyTorch nn.init.kaiming_normal_ default: std = sqrt(2 / fan_in).
            std = math.sqrt(2.0 / in_s)
            return std * jax.random.normal(k, (in_s, out_s), dtype=jnp.float32)

        keys = jax.random.split(key, self.n_enc + self.n_dec + 2)
        ki = 0
        self.enc_ws = []
        for in_s, out_s in zip(enc_sizes[:-1], enc_sizes[1:]):
            self.enc_ws.append(kaiming(keys[ki], in_s, out_s)); ki += 1
        self.dec_ws = []
        for in_s, out_s in zip(dec_sizes[:-1], dec_sizes[1:]):
            self.dec_ws.append(kaiming(keys[ki], in_s, out_s)); ki += 1
        self.w_enc_head = kaiming(keys[ki], enc_sizes[-1], 2 * latent_size); ki += 1
        self.w_dec_head = kaiming(keys[ki], dec_sizes[-1], 2 * latent_size); ki += 1
        # All biases are zero (nn.init.constant_(m.bias, 0)).

        # ---- pack everything into ONE bf16 weight slab + ONE f32 bias slab ----
        n_blocks = self.n_enc + self.n_dec + 2
        w_slab = np.zeros((n_blocks * P, P), np.float32)
        blk = 0
        for w in self.enc_ws:
            # Encoder layer 0 consumes cat((y, x)): rows 0:dy = y-rows, dy:dy+dx = x-rows,
            # matching torch.cat((y, x), dim=1) ordering.
            w = np.asarray(w)
            w_slab[blk * P: blk * P + w.shape[0], :w.shape[1]] = w
            blk += 1
        for li, w in enumerate(self.dec_ws):
            w = np.asarray(w)
            r0 = self.dy if li == 0 else 0      # decoder layer 0 reads x at cols dy:dy+dx
            w_slab[blk * P + r0: blk * P + r0 + w.shape[0], :w.shape[1]] = w
            blk += 1
        L = latent_size
        we = np.asarray(self.w_enc_head)
        wd = np.asarray(self.w_dec_head)
        w_slab[blk * P: blk * P + we.shape[0], 0:2 * L] = we                  # enc head block
        w_slab[(blk + 1) * P: (blk + 1) * P + wd.shape[0], 2 * L:4 * L] = wd  # dec head block
        self.w_slab = jnp.asarray(w_slab, dtype=jnp.bfloat16)

        nb = self.n_enc + self.n_dec + 1
        self.b_slab = jnp.zeros((_round_up(max(nb, 8), 8), P), jnp.float32)

    def forward(self, y, x):
        # TODO(synk): x=None (non-conditional) is unsupported — the decoder always
        # consumes x, mirroring the original PyTorch crash behavior for decoder(None).
        B = y.shape[0]
        P, L = self.P, self.latent_size

        # Lane-pack y | x into one [B, P] input slab (layout plumbing only).
        a0 = jnp.zeros((B, P), jnp.float32)
        a0 = a0.at[:, :self.dy].set(y.astype(jnp.float32))
        a0 = a0.at[:, self.dy:self.dy + self.dx].set(x.astype(jnp.float32))

        inputs = [a0, self.w_slab, self.b_slab]

        n_layers = self.n_enc + self.n_dec
        flops = 2 * B * P * P * n_layers + 2 * B * (2 * P) * P
        trans = B * P * n_layers
        bytes_accessed = (sum(int(a.size) * a.dtype.itemsize for a in inputs)
                          + B * P * 4)

        kernel = functools.partial(_vae_fused_kernel, self.n_enc, self.n_dec, P)
        packed = pl.pallas_call(
            kernel,
            out_shape=jax.ShapeDtypeStruct((B, P), jnp.float32),
            in_specs=[pl.BlockSpec(memory_space=pltpu.MemorySpace.VMEM)
                      for _ in inputs],
            out_specs=pl.BlockSpec(memory_space=pltpu.MemorySpace.VMEM),
            cost_estimate=pl.CostEstimate(
                flops=int(flops),
                transcendentals=int(trans),
                bytes_accessed=int(bytes_accessed)),
        )(*inputs)

        return (packed[:, :L], packed[:, L:2 * L],
                packed[:, 2 * L:3 * L], packed[:, 3 * L:4 * L])


# ----------------------------------------------------------------------------
# Pure-JAX reference (mirrors the kernel's bf16-matmul / f32-accumulate path)
# ----------------------------------------------------------------------------
def _ref_forward(model, y, x):
    def dot(a, w):
        return jnp.dot(a.astype(jnp.bfloat16), w.astype(jnp.bfloat16),
                       preferred_element_type=jnp.float32)

    h = jnp.concatenate([y, x], axis=-1) if model.conditional else y
    for w in model.enc_ws:
        h = jnp.tanh(dot(h, w))
    enc = dot(h, model.w_enc_head)

    hd = x
    for w in model.dec_ws:
        hd = jnp.tanh(dot(hd, w))
    dec = dot(hd, model.w_dec_head)

    L = model.latent_size
    return enc[:, :L], enc[:, L:], dec[:, :L], dec[:, L:]


if __name__ == "__main__":
    key = jax.random.PRNGKey(0)
    k_params, k_y, k_x = jax.random.split(key, 3)

    batch = 8
    num_labels = 8
    latent_size = 16
    encoder_layer_sizes = [32, 64, 32]   # encoder input feats (+ num_labels when conditional)
    decoder_layer_sizes = [8, 32, 32]    # decoder consumes x (labels): first size == num_labels

    model = VAEPallas(encoder_layer_sizes, decoder_layer_sizes, latent_size,
                      batch_size=batch, conditional=True, num_labels=num_labels,
                      key=k_params)

    y = jax.random.normal(k_y, (batch, encoder_layer_sizes[0]), dtype=jnp.float32)
    x = jax.random.normal(k_x, (batch, num_labels), dtype=jnp.float32)

    fwd = jax.jit(model.forward)
    mu_phi, log_var_phi, mu_theta, log_var_theta = fwd(y, x)
    jax.block_until_ready((mu_phi, log_var_phi, mu_theta, log_var_theta))

    # Sanity check against the pure-JAX reference.
    refs = _ref_forward(model, y, x)
    outs = (mu_phi, log_var_phi, mu_theta, log_var_theta)
    for got, want in zip(outs, refs):
        assert got.shape == (batch, latent_size)
        assert jnp.allclose(got, want, atol=1e-2, rtol=1e-2), \
            float(jnp.max(jnp.abs(got - want)))

    print("KERNEL_OK")
</pallas_src>

<mosaic_0001>
module attributes {stable_mosaic.version = 11 : i64} {
  func.func @_vae_fused_kernel(%arg0: memref<8x128xf32, #tpu.memory_space<vmem>>, %arg1: memref<768x128xbf16, #tpu.memory_space<vmem>>, %arg2: memref<8x128xf32, #tpu.memory_space<vmem>>, %arg3: memref<8x128xf32, #tpu.memory_space<vmem>>) attributes {dimension_semantics = [], scalar_prefetch = 0 : i64, scratch_operands = 0 : i64, tpu.core_type = #tpu.core_type<tc>} {
    %c0 = arith.constant 0 : index
    %c0_0 = arith.constant 0 : index
    %0 = vector.load %arg0[%c0, %c0_0] : memref<8x128xf32, #tpu.memory_space<vmem>>, vector<8x128xf32>
    %1 = arith.truncf %0 : vector<8x128xf32> to vector<8x128xbf16>
    %c0_1 = arith.constant 0 : index
    %c0_2 = arith.constant 0 : index
    %2 = vector.load %arg1[%c0_1, %c0_2] : memref<768x128xbf16, #tpu.memory_space<vmem>>, vector<128x128xbf16>
    %cst = arith.constant dense<0.000000e+00> : vector<8x128xf32>
    %3 = tpu.matmul %1, %2, %cst {dimension_numbers = #tpu.dot_dimension_numbers<[1], [0], [0], [1], [0, 0, 1, 1], [], []>} : vector<8x128xbf16>, vector<128x128xbf16>, vector<8x128xf32> -> vector<8x128xf32>
    %c0_3 = arith.constant 0 : index
    %c0_4 = arith.constant 0 : index
    %4 = vector.load %arg2[%c0_3, %c0_4] : memref<8x128xf32, #tpu.memory_space<vmem>>, vector<1x128xf32>
    %5 = vector.broadcast %4 : vector<1x128xf32> to vector<8x128xf32>
    %6 = arith.addf %3, %5 : vector<8x128xf32>
    %7 = math.tanh %6 : vector<8x128xf32>
    %8 = arith.truncf %7 : vector<8x128xf32> to vector<8x128xbf16>
    %c128 = arith.constant 128 : index
    %c0_5 = arith.constant 0 : index
    %9 = vector.load %arg1[%c128, %c0_5] : memref<768x128xbf16, #tpu.memory_space<vmem>>, vector<128x128xbf16>
    %cst_6 = arith.constant dense<0.000000e+00> : vector<8x128xf32>
    %10 = tpu.matmul %8, %9, %cst_6 {dimension_numbers = #tpu.dot_dimension_numbers<[1], [0], [0], [1], [0, 0, 1, 1], [], []>} : vector<8x128xbf16>, vector<128x128xbf16>, vector<8x128xf32> -> vector<8x128xf32>
    %c1 = arith.constant 1 : index
    %c0_7 = arith.constant 0 : index
    %11 = vector.load %arg2[%c1, %c0_7] : memref<8x128xf32, #tpu.memory_space<vmem>>, vector<1x128xf32>
    %12 = vector.broadcast %11 : vector<1x128xf32> to vector<8x128xf32>
    %13 = arith.addf %10, %12 : vector<8x128xf32>
    %14 = math.tanh %13 : vector<8x128xf32>
    %15 = arith.truncf %14 : vector<8x128xf32> to vector<8x128xbf16>
    %c256 = arith.constant 256 : index
    %c0_8 = arith.constant 0 : index
    %16 = vector.load %arg1[%c256, %c0_8] : memref<768x128xbf16, #tpu.memory_space<vmem>>, vector<128x128xbf16>
    %cst_9 = arith.constant dense<0.000000e+00> : vector<8x128xf32>
    %17 = tpu.matmul %1, %16, %cst_9 {dimension_numbers = #tpu.dot_dimension_numbers<[1], [0], [0], [1], [0, 0, 1, 1], [], []>} : vector<8x128xbf16>, vector<128x128xbf16>, vector<8x128xf32> -> vector<8x128xf32>
    %c2 = arith.constant 2 : index
    %c0_10 = arith.constant 0 : index
    %18 = vector.load %arg2[%c2, %c0_10] : memref<8x128xf32, #tpu.memory_space<vmem>>, vector<1x128xf32>
    %19 = vector.broadcast %18 : vector<1x128xf32> to vector<8x128xf32>
    %20 = arith.addf %17, %19 : vector<8x128xf32>
    %21 = math.tanh %20 : vector<8x128xf32>
    %22 = arith.truncf %21 : vector<8x128xf32> to vector<8x128xbf16>
    %c384 = arith.constant 384 : index
    %c0_11 = arith.constant 0 : index
    %23 = vector.load %arg1[%c384, %c0_11] : memref<768x128xbf16, #tpu.memory_space<vmem>>, vector<128x128xbf16>
    %cst_12 = arith.constant dense<0.000000e+00> : vector<8x128xf32>
    %24 = tpu.matmul %22, %23, %cst_12 {dimension_numbers = #tpu.dot_dimension_numbers<[1], [0], [0], [1], [0, 0, 1, 1], [], []>} : vector<8x128xbf16>, vector<128x128xbf16>, vector<8x128xf32> -> vector<8x128xf32>
    %c3 = arith.constant 3 : index
    %c0_13 = arith.constant 0 : index
    %25 = vector.load %arg2[%c3, %c0_13] : memref<8x128xf32, #tpu.memory_space<vmem>>, vector<1x128xf32>
    %26 = vector.broadcast %25 : vector<1x128xf32> to vector<8x128xf32>
    %27 = arith.addf %24, %26 : vector<8x128xf32>
    %28 = math.tanh %27 : vector<8x128xf32>
    %29 = arith.truncf %28 : vector<8x128xf32> to vector<8x128xbf16>
    %c512 = arith.constant 512 : index
    %c0_14 = arith.constant 0 : index
    %30 = vector.load %arg1[%c512, %c0_14] : memref<768x128xbf16, #tpu.memory_space<vmem>>, vector<128x128xbf16>
    %c640 = arith.constant 640 : index
    %c0_15 = arith.constant 0 : index
    %31 = vector.load %arg1[%c640, %c0_15] : memref<768x128xbf16, #tpu.memory_space<vmem>>, vector<128x128xbf16>
    %cst_16 = arith.constant dense<0.000000e+00> : vector<8x128xf32>
    %32 = tpu.matmul %15, %30, %cst_16 {dimension_numbers = #tpu.dot_dimension_numbers<[1], [0], [0], [1], [0, 0, 1, 1], [], []>} : vector<8x128xbf16>, vector<128x128xbf16>, vector<8x128xf32> -> vector<8x128xf32>
    %cst_17 = arith.constant dense<0.000000e+00> : vector<8x128xf32>
    %33 = tpu.matmul %29, %31, %cst_17 {dimension_numbers = #tpu.dot_dimension_numbers<[1], [0], [0], [1], [0, 0, 1, 1], [], []>} : vector<8x128xbf16>, vector<128x128xbf16>, vector<8x128xf32> -> vector<8x128xf32>
    %34 = arith.addf %32, %33 : vector<8x128xf32>
    %c4 = arith.constant 4 : index
    %c0_18 = arith.constant 0 : index
    %35 = vector.load %arg2[%c4, %c0_18] : memref<8x128xf32, #tpu.memory_space<vmem>>, vector<1x128xf32>
    %36 = vector.broadcast %35 : vector<1x128xf32> to vector<8x128xf32>
    %37 = arith.addf %34, %36 : vector<8x128xf32>
    %c0_19 = arith.constant 0 : index
    %c0_20 = arith.constant 0 : index
    %38 = vector.load %arg3[%c0_19, %c0_20] : memref<8x128xf32, #tpu.memory_space<vmem>>, vector<8x128xf32>
    tpu.vector_store %arg3[%c0_19, %c0_20], %37 {strides = array<i32>} : memref<8x128xf32, #tpu.memory_space<vmem>>, vector<8x128xf32>,
    return
  }
}

</mosaic_0001>

<llo_original>
// kernel: forward.1
$region0: #{forward.1}
  #allocation0 [shape = 'u32[]', space=smem, size = 0x4, offset = 0x4, fixed_abs, tag = 'smem constant byte address 0x4 - core index']
  #allocation1 [shape = 'u32[144,128]{1,0:T(1,128)}', space=vmem, size = 0x12000, scoped, tag = 'internal scratch']
  %s0 = inlined_call_operand.vmem [shape: f32[8,128], index: 0, kind: input, shape index: {}]
  %s1 = inlined_call_operand.hbm [shape: bf16[768,128], index: 1, kind: input, shape index: {}]
  %s2 = inlined_call_operand.vmem [shape: f32[8,128], index: 2, kind: input, shape index: {}]
  %s3 = inlined_call_operand.vmem [shape: f32[8,128], index: 3, kind: output, shape index: {}]
  %s4 = sld [smem:[#allocation0]]
  $region26: #{forward.1} parent=0
    _
  %s6 = ssub.s32 1, %s4
  %s7 = scalar_select 0, %s6, %s4
  $region1: #{forward.1} parent=0
    #allocation2 [shape = 'u8[196608]{0}', space=vmem, size = 0x30000, scoped, tag = 'input window, operand 1, single buffered']
    #allocation3 [shape = 's32[1]{0}', space=sflag, size = 0x4, scoped, tag = 'scoped memory for forward.1']
    %8 = vsyncpa [#allocation3], 0
    // Predicated region
    $region2: #{forward.1} parent=1 // pred_check
      _
    $region3: #{forward.1} parent=1 // pred_check_branch
      %10 = sbr.rel (0) target = $region5
    $region4: #{forward.1} parent=1 // pred_region
      _
    $region5: #{forward.1} parent=1 // pred_fallthru
      _
    // Predicated region
    $region6: #{forward.1} parent=1 // pred_check
      _
    $region7: #{forward.1} parent=1 // pred_check_branch
      %12 = sbr.rel (0) target = $region9
    $region8: #{forward.1} parent=1 // pred_region
      %s14 = ssub.s32 6144, 6144
      %15 = vsyncadd [#allocation3], %s14
      %s16 = sshll.u32 [#allocation2], 4
      %s17 = int_to_ptr.vmem [resolvable:$true] %s16
      %22 = dma.hbm_to_vmem [thread:$0]  %s1, 6144, %s17, [#allocation3], 64, 64, 4
    $region9: #{forward.1} parent=1 // pred_fallthru
      _
    // Predicated region
    $region10: #{forward.1} parent=1 // pred_check
      _
    $region11: #{forward.1} parent=1 // pred_check_branch
      %24 = sbr.rel (0) target = $region13
    $region12: #{forward.1} parent=1 // pred_region
      _
    $region13: #{forward.1} parent=1 // pred_fallthru
      _
    // Predicated region
    $region14: #{forward.1} parent=1 // pred_check
      _
    $region15: #{forward.1} parent=1 // pred_check_branch
      %26 = sbr.rel (0) target = $region17
    $region16: #{forward.1} parent=1 // pred_region
      %27 = dma.done [#allocation3], 6144
    $region17: #{forward.1} parent=1 // pred_fallthru
      _
    %v29 = vld [vmem:[%s0] sm:$0xff]
    %v30 = vpack.c.bf16 %v29, %v29
    %v31 = vld [vmem:[#allocation2] sm:$0xf]
    %v32 = vld [vmem:[#allocation2 + $0x4] sm:$0xf]
    %v33 = vld [vmem:[#allocation2 + $0x8] sm:$0xf]
    %v34 = vld [vmem:[#allocation2 + $0xc] sm:$0xf]
    %v35 = vld [vmem:[#allocation2 + $0x10] sm:$0xf]
    %v36 = vld [vmem:[#allocation2 + $0x14] sm:$0xf]
    %v37 = vld [vmem:[#allocation2 + $0x18] sm:$0xf]
    %v38 = vld [vmem:[#allocation2 + $0x1c] sm:$0xf]
    %v39 = vld [vmem:[#allocation2 + $0x20] sm:$0xf]
    %v40 = vld [vmem:[#allocation2 + $0x24] sm:$0xf]
    %v41 = vld [vmem:[#allocation2 + $0x28] sm:$0xf]
    %v42 = vld [vmem:[#allocation2 + $0x2c] sm:$0xf]
    %v43 = vld [vmem:[#allocation2 + $0x30] sm:$0xf]
    %v44 = vld [vmem:[#allocation2 + $0x34] sm:$0xf]
    %v45 = vld [vmem:[#allocation2 + $0x38] sm:$0xf]
    %v46 = vld [vmem:[#allocation2 + $0x3c] sm:$0xf]
    %v47 = vld [vmem:[%s2] sm:$0x1]
    %v48 = vlaneseq
    %v49 = vshrl.u32 %v48, 7
    %v50 = vsub.s32 0, %v49
    %v51 = vrot.slane %v47, %v50
    %v68 = vunpack.c.l.b16 %v31
    %v69 = vunpack.c.l.b16 %v32
    %v70 = vunpack.c.l.b16 %v33
    %v71 = vunpack.c.l.b16 %v34
    %v72 = vunpack.c.l.b16 %v35
    %v73 = vunpack.c.l.b16 %v36
    %v74 = vunpack.c.l.b16 %v37
    %v75 = vunpack.c.l.b16 %v38
    %v76 = vunpack.c.l.b16 %v39
    %v77 = vunpack.c.l.b16 %v40
    %v78 = vunpack.c.l.b16 %v41
    %v79 = vunpack.c.l.b16 %v42
    %v80 = vunpack.c.l.b16 %v43
    %v81 = vunpack.c.l.b16 %v44
    %v82 = vunpack.c.l.b16 %v45
    %v83 = vunpack.c.l.b16 %v46
    %v84 = vpack.c.b16 %v69, %v68
    %v85 = vpack.c.b16 %v71, %v70
    %v86 = vpack.c.b16 %v73, %v72
    %v87 = vpack.c.b16 %v75, %v74
    %v88 = vpack.c.b16 %v77, %v76
    %v89 = vpack.c.b16 %v79, %v78
    %v90 = vpack.c.b16 %v81, %v80
    %v91 = vpack.c.b16 %v83, %v82
    %100 = vmatprep.subr.bf16.mxu0 0
    %101 = vmatpush1.bf16.msra.mxu0 %v84
    %102 = vmatprep.subr.bf16.mxu0 0
    %103 = vmatpush1.bf16.msra.mxu0 %v85
    %104 = vmatprep.subr.bf16.mxu0 0
    %105 = vmatpush1.bf16.msra.mxu0 %v86
    %106 = vmatprep.subr.bf16.mxu0 0
    %107 = vmatpush1.bf16.msra.mxu0 %v87
    %108 = vmatprep.subr.bf16.mxu0 0
    %109 = vmatpush1.bf16.msra.mxu0 %v88
    %110 = vmatprep.subr.bf16.mxu0 0
    %111 = vmatpush1.bf16.msra.mxu0 %v89
    %112 = vmatprep.subr.bf16.mxu0 0
    %113 = vmatpush1.bf16.msra.mxu0 %v90
    %114 = vmatprep.subr.bf16.mxu0 0
    %115 = vmatpush1.bf16.msra.mxu0 %v91
    %116 = vmatprep.subr.bf16.mxu0 0
    %117 = vmatpush1.bf16.msra.mxu0 0
    %118 = vmatprep.subr.bf16.mxu0 0
    %119 = vmatpush1.bf16.msra.mxu0 0
    %120 = vmatprep.subr.bf16.mxu0 0
    %121 = vmatpush1.bf16.msra.mxu0 0
    %122 = vmatprep.subr.bf16.mxu0 0
    %123 = vmatpush1.bf16.msra.mxu0 0
    %124 = vmatprep.subr.bf16.mxu0 0
    %125 = vmatpush1.bf16.msra.mxu0 0
    %126 = vmatprep.subr.bf16.mxu0 0
    %127 = vmatpush1.bf16.msra.mxu0 0
    %128 = vmatprep.subr.bf16.mxu0 0
    %129 = vmatpush1.bf16.msra.mxu0 0
    %130 = vmatprep.subr.bf16.mxu0 0
    %131 = vmatpush1.bf16.msra.mxu0 0
    %132 = vmatprep.mubr.bf16.mxu0 0
    %133 = vmatmul.mubr.bf16.gmra.mrb[0].mxu0 %v30
    %v134 = vpop.f32.mrb[0].mxu0
    %v135 = vadd.f32 %v51, %v134
    %v136 = vpop.f32.mrb[0].mxu0
    %v137 = vpop.f32.mrb[0].mxu0
    %v138 = vpop.f32.mrb[0].mxu0
    %139 = vdwg.mxu0
    %v140 = vtanh.pop %v135
    %v141 = vpack.c.bf16 %v140, %v140
    %v142 = vld [vmem:[#allocation2 + $0x40] sm:$0xf]
    %v143 = vld [vmem:[#allocation2 + $0x44] sm:$0xf]
    %v144 = vld [vmem:[#allocation2 + $0x48] sm:$0xf]
    %v145 = vld [vmem:[#allocation2 + $0x4c] sm:$0xf]
    %v146 = vld [vmem:[#allocation2 + $0x50] sm:$0xf]
    %v147 = vld [vmem:[#allocation2 + $0x54] sm:$0xf]
    %v148 = vld [vmem:[#allocation2 + $0x58] sm:$0xf]
    %v149 = vld [vmem:[#allocation2 + $0x5c] sm:$0xf]
    %v150 = vld [vmem:[#allocation2 + $0x60] sm:$0xf]
    %v151 = vld [vmem:[#allocation2 + $0x64] sm:$0xf]
    %v152 = vld [vmem:[#allocation2 + $0x68] sm:$0xf]
    %v153 = vld [vmem:[#allocation2 + $0x6c] sm:$0xf]
    %v154 = vld [vmem:[#allocation2 + $0x70] sm:$0xf]
    %v155 = vld [vmem:[#allocation2 + $0x74] sm:$0xf]
    %v156 = vld [vmem:[#allocation2 + $0x78] sm:$0xf]
    %v157 = vld [vmem:[#allocation2 + $0x7c] sm:$0xf]
    %v158 = vld [vmem:[%s2 + $0x1] sm:$0x1]
    %v159 = vlaneseq
    %v160 = vshrl.u32 %v159, 7
    %v161 = vsub.s32 0, %v160
    %v162 = vrot.slane %v158, %v161
    %v179 = vunpack.c.l.b16 %v142
    %v180 = vunpack.c.l.b16 %v143
    %v181 = vunpack.c.l.b16 %v144
    %v182 = vunpack.c.l.b16 %v145
    %v183 = vunpack.c.l.b16 %v146
    %v184 = vunpack.c.l.b16 %v147
    %v185 = vunpack.c.l.b16 %v148
    %v186 = vunpack.c.l.b16 %v149
    %v187 = vunpack.c.l.b16 %v150
    %v188 = vunpack.c.l.b16 %v151
    %v189 = vunpack.c.l.b16 %v152
    %v190 = vunpack.c.l.b16 %v153
    %v191 = vunpack.c.l.b16 %v154
    %v192 = vunpack.c.l.b16 %v155
    %v193 = vunpack.c.l.b16 %v156
    %v194 = vunpack.c.l.b16 %v157
    %v195 = vpack.c.b16 %v180, %v179
    %v196 = vpack.c.b16 %v182, %v181
    %v197 = vpack.c.b16 %v184, %v183
    %v198 = vpack.c.b16 %v186, %v185
    %v199 = vpack.c.b16 %v188, %v187
    %v200 = vpack.c.b16 %v190, %v189
    %v201 = vpack.c.b16 %v192, %v191
    %v202 = vpack.c.b16 %v194, %v193
    %211 = vmatprep.subr.bf16.mxu0 0
    %212 = vmatpush1.bf16.msra.mxu0 %v195
    %213 = vmatprep.subr.bf16.mxu0 0
    %214 = vmatpush1.bf16.msra.mxu0 %v196
    %215 = vmatprep.subr.bf16.mxu0 0
    %216 = vmatpush1.bf16.msra.mxu0 %v197
    %217 = vmatprep.subr.bf16.mxu0 0
    %218 = vmatpush1.bf16.msra.mxu0 %v198
    %219 = vmatprep.subr.bf16.mxu0 0
    %220 = vmatpush1.bf16.msra.mxu0 %v199
    %221 = vmatprep.subr.bf16.mxu0 0
    %222 = vmatpush1.bf16.msra.mxu0 %v200
    %223 = vmatprep.subr.bf16.mxu0 0
    %224 = vmatpush1.bf16.msra.mxu0 %v201
    %225 = vmatprep.subr.bf16.mxu0 0
    %226 = vmatpush1.bf16.msra.mxu0 %v202
    %227 = vmatprep.subr.bf16.mxu0 0
    %228 = vmatpush1.bf16.msra.mxu0 0
    %229 = vmatprep.subr.bf16.mxu0 0
    %230 = vmatpush1.bf16.msra.mxu0 0
    %231 = vmatprep.subr.bf16.mxu0 0
    %232 = vmatpush1.bf16.msra.mxu0 0
    %233 = vmatprep.subr.bf16.mxu0 0
    %234 = vmatpush1.bf16.msra.mxu0 0
    %235 = vmatprep.subr.bf16.mxu0 0
    %236 = vmatpush1.bf16.msra.mxu0 0
    %237 = vmatprep.subr.bf16.mxu0 0
    %238 = vmatpush1.bf16.msra.mxu0 0
    %239 = vmatprep.subr.bf16.mxu0 0
    %240 = vmatpush1.bf16.msra.mxu0 0
    %241 = vmatprep.subr.bf16.mxu0 0
    %242 = vmatpush1.bf16.msra.mxu0 0
    %243 = vmatprep.mubr.bf16.mxu0 0
    %244 = vmatmul.mubr.bf16.gmra.mrb[0].mxu0 %v141
    %v245 = vpop.f32.mrb[0].mxu0
    %v246 = vadd.f32 %v162, %v245
    %v247 = vpop.f32.mrb[0].mxu0
    %v248 = vpop.f32.mrb[0].mxu0
    %v249 = vpop.f32.mrb[0].mxu0
    %250 = vdwg.mxu0
    %v251 = vtanh.pop %v246
    %v252 = vpack.c.bf16 %v251, %v251
    %v253 = vld [vmem:[#allocation2 + $0x80] sm:$0xf]
    %v254 = vld [vmem:[#allocation2 + $0x84] sm:$0xf]
    %v255 = vld [vmem:[#allocation2 + $0x88] sm:$0xf]
    %v256 = vld [vmem:[#allocation2 + $0x8c] sm:$0xf]
    %v257 = vld [vmem:[#allocation2 + $0x90] sm:$0xf]
    %v258 = vld [vmem:[#allocation2 + $0x94] sm:$0xf]
    %v259 = vld [vmem:[#allocation2 + $0x98] sm:$0xf]
    %v260 = vld [vmem:[#allocation2 + $0x9c] sm:$0xf]
    %v261 = vld [vmem:[#allocation2 + $0xa0] sm:$0xf]
    %v262 = vld [vmem:[#allocation2 + $0xa4] sm:$0xf]
    %v263 = vld [vmem:[#allocation2 + $0xa8] sm:$0xf]
    %v264 = vld [vmem:[#allocation2 + $0xac] sm:$0xf]
    %v265 = vld [vmem:[#allocation2 + $0xb0] sm:$0xf]
    %v266 = vld [vmem:[#allocation2 + $0xb4] sm:$0xf]
    %v267 = vld [vmem:[#allocation2 + $0xb8] sm:$0xf]
    %v268 = vld [vmem:[#allocation2 + $0xbc] sm:$0xf]
    %v269 = vld [vmem:[%s2 + $0x2] sm:$0x1]
    %v270 = vlaneseq
    %v271 = vshrl.u32 %v270, 7
    %v272 = vsub.s32 0, %v271
    %v273 = vrot.slane %v269, %v272
    %v290 = vunpack.c.l.b16 %v253
    %v291 = vunpack.c.l.b16 %v254
    %v292 = vunpack.c.l.b16 %v255
    %v293 = vunpack.c.l.b16 %v256
    %v294 = vunpack.c.l.b16 %v257
    %v295 = vunpack.c.l.b16 %v258
    %v296 = vunpack.c.l.b16 %v259
    %v297 = vunpack.c.l.b16 %v260
    %v298 = vunpack.c.l.b16 %v261
    %v299 = vunpack.c.l.b16 %v262
    %v300 = vunpack.c.l.b16 %v263
    %v301 = vunpack.c.l.b16 %v264
    %v302 = vunpack.c.l.b16 %v265
    %v303 = vunpack.c.l.b16 %v266
    %v304 = vunpack.c.l.b16 %v267
    %v305 = vunpack.c.l.b16 %v268
    %v306 = vpack.c.b16 %v291, %v290
    %v307 = vpack.c.b16 %v293, %v292
    %v308 = vpack.c.b16 %v295, %v294
    %v309 = vpack.c.b16 %v297, %v296
    %v310 = vpack.c.b16 %v299, %v298
    %v311 = vpack.c.b16 %v301, %v300
    %v312 = vpack.c.b16 %v303, %v302
    %v313 = vpack.c.b16 %v305, %v304
    %322 = vmatprep.subr.bf16.mxu0 0
    %323 = vmatpush1.bf16.msra.mxu0 %v306
    %324 = vmatprep.subr.bf16.mxu0 0
    %325 = vmatpush1.bf16.msra.mxu0 %v307
    %326 = vmatprep.subr.bf16.mxu0 0
    %327 = vmatpush1.bf16.msra.mxu0 %v308
    %328 = vmatprep.subr.bf16.mxu0 0
    %329 = vmatpush1.bf16.msra.mxu0 %v309
    %330 = vmatprep.subr.bf16.mxu0 0
    %331 = vmatpush1.bf16.msra.mxu0 %v310
    %332 = vmatprep.subr.bf16.mxu0 0
    %333 = vmatpush1.bf16.msra.mxu0 %v311
    %334 = vmatprep.subr.bf16.mxu0 0
    %335 = vmatpush1.bf16.msra.mxu0 %v312
    %336 = vmatprep.subr.bf16.mxu0 0
    %337 = vmatpush1.bf16.msra.mxu0 %v313
    %338 = vmatprep.subr.bf16.mxu0 0
    %339 = vmatpush1.bf16.msra.mxu0 0
    %340 = vmatprep.subr.bf16.mxu0 0
    %341 = vmatpush1.bf16.msra.mxu0 0
    %342 = vmatprep.subr.bf16.mxu0 0
    %343 = vmatpush1.bf16.msra.mxu0 0
    %344 = vmatprep.subr.bf16.mxu0 0
    %345 = vmatpush1.bf16.msra.mxu0 0
    %346 = vmatprep.subr.bf16.mxu0 0
    %347 = vmatpush1.bf16.msra.mxu0 0
    %348 = vmatprep.subr.bf16.mxu0 0
    %349 = vmatpush1.bf16.msra.mxu0 0
    %350 = vmatprep.subr.bf16.mxu0 0
    %351 = vmatpush1.bf16.msra.mxu0 0
    %352 = vmatprep.subr.bf16.mxu0 0
    %353 = vmatpush1.bf16.msra.mxu0 0
    %354 = vmatprep.mubr.bf16.mxu0 0
    %355 = vmatmul.mubr.bf16.gmra.mrb[0].mxu0 %v30
    %v356 = vpop.f32.mrb[0].mxu0
    %v357 = vadd.f32 %v273, %v356
    %v358 = vpop.f32.mrb[0].mxu0
    %v359 = vpop.f32.mrb[0].mxu0
    %v360 = vpop.f32.mrb[0].mxu0
    %361 = vdwg.mxu0
    %v362 = vtanh.pop %v357
    %v363 = vpack.c.bf16 %v362, %v362
    %v364 = vld [vmem:[#allocation2 + $0xc0] sm:$0xf]
    %v365 = vld [vmem:[#allocation2 + $0xc4] sm:$0xf]
    %v366 = vld [vmem:[#allocation2 + $0xc8] sm:$0xf]
    %v367 = vld [vmem:[#allocation2 + $0xcc] sm:$0xf]
    %v368 = vld [vmem:[#allocation2 + $0xd0] sm:$0xf]
    %v369 = vld [vmem:[#allocation2 + $0xd4] sm:$0xf]
    %v370 = vld [vmem:[#allocation2 + $0xd8] sm:$0xf]
    %v371 = vld [vmem:[#allocation2 + $0xdc] sm:$0xf]
    %v372 = vld [vmem:[#allocation2 + $0xe0] sm:$0xf]
    %v373 = vld [vmem:[#allocation2 + $0xe4] sm:$0xf]
    %v374 = vld [vmem:[#allocation2 + $0xe8] sm:$0xf]
    %v375 = vld [vmem:[#allocation2 + $0xec] sm:$0xf]
    %v376 = vld [vmem:[#allocation2 + $0xf0] sm:$0xf]
    %v377 = vld [vmem:[#allocation2 + $0xf4] sm:$0xf]
    %v378 = vld [vmem:[#allocation2 + $0xf8] sm:$0xf]
    %v379 = vld [vmem:[#allocation2 + $0xfc] sm:$0xf]
    %v380 = vld [vmem:[%s2 + $0x3] sm:$0x1]
    %v381 = vlaneseq
    %v382 = vshrl.u32 %v381, 7
    %v383 = vsub.s32 0, %v382
    %v384 = vrot.slane %v380, %v383
    %v401 = vunpack.c.l.b16 %v364
    %v402 = vunpack.c.l.b16 %v365
    %v403 = vunpack.c.l.b16 %v366
    %v404 = vunpack.c.l.b16 %v367
    %v405 = vunpack.c.l.b16 %v368
    %v406 = vunpack.c.l.b16 %v369
    %v407 = vunpack.c.l.b16 %v370
    %v408 = vunpack.c.l.b16 %v371
    %v409 = vunpack.c.l.b16 %v372
    %v410 = vunpack.c.l.b16 %v373
    %v411 = vunpack.c.l.b16 %v374
    %v412 = vunpack.c.l.b16 %v375
    %v413 = vunpack.c.l.b16 %v376
    %v414 = vunpack.c.l.b16 %v377
    %v415 = vunpack.c.l.b16 %v378
    %v416 = vunpack.c.l.b16 %v379
    %v417 = vpack.c.b16 %v402, %v401
    %v418 = vpack.c.b16 %v404, %v403
    %v419 = vpack.c.b16 %v406, %v405
    %v420 = vpack.c.b16 %v408, %v407
    %v421 = vpack.c.b16 %v410, %v409
    %v422 = vpack.c.b16 %v412, %v411
    %v423 = vpack.c.b16 %v414, %v413
    %v424 = vpack.c.b16 %v416, %v415
    %433 = vmatprep.subr.bf16.mxu0 0
    %434 = vmatpush1.bf16.msra.mxu0 %v417
    %435 = vmatprep.subr.bf16.mxu0 0
    %436 = vmatpush1.bf16.msra.mxu0 %v418
    %437 = vmatprep.subr.bf16.mxu0 0
    %438 = vmatpush1.bf16.msra.mxu0 %v419
    %439 = vmatprep.subr.bf16.mxu0 0
    %440 = vmatpush1.bf16.msra.mxu0 %v420
    %441 = vmatprep.subr.bf16.mxu0 0
    %442 = vmatpush1.bf16.msra.mxu0 %v421
    %443 = vmatprep.subr.bf16.mxu0 0
    %444 = vmatpush1.bf16.msra.mxu0 %v422
    %445 = vmatprep.subr.bf16.mxu0 0
    %446 = vmatpush1.bf16.msra.mxu0 %v423
    %447 = vmatprep.subr.bf16.mxu0 0
    %448 = vmatpush1.bf16.msra.mxu0 %v424
    %449 = vmatprep.subr.bf16.mxu0 0
    %450 = vmatpush1.bf16.msra.mxu0 0
    %451 = vmatprep.subr.bf16.mxu0 0
    %452 = vmatpush1.bf16.msra.mxu0 0
    %453 = vmatprep.subr.bf16.mxu0 0
    %454 = vmatpush1.bf16.msra.mxu0 0
    %455 = vmatprep.subr.bf16.mxu0 0
    %456 = vmatpush1.bf16.msra.mxu0 0
    %457 = vmatprep.subr.bf16.mxu0 0
    %458 = vmatpush1.bf16.msra.mxu0 0
    %459 = vmatprep.subr.bf16.mxu0 0
    %460 = vmatpush1.bf16.msra.mxu0 0
    %461 = vmatprep.subr.bf16.mxu0 0
    %462 = vmatpush1.bf16.msra.mxu0 0
    %463 = vmatprep.subr.bf16.mxu0 0
    %464 = vmatpush1.bf16.msra.mxu0 0
    %465 = vmatprep.mubr.bf16.mxu0 0
    %466 = vmatmul.mubr.bf16.gmra.mrb[0].mxu0 %v363
    %v467 = vpop.f32.mrb[0].mxu0
    %v468 = vadd.f32 %v384, %v467
    %v469 = vpop.f32.mrb[0].mxu0
    %v470 = vpop.f32.mrb[0].mxu0
    %v471 = vpop.f32.mrb[0].mxu0
    %472 = vdwg.mxu0
    %v473 = vtanh.pop %v468
    %v474 = vpack.c.bf16 %v473, %v473
    %v475 = vld [vmem:[#allocation2 + $0x100] sm:$0xf]
    %v476 = vld [vmem:[#allocation2 + $0x104] sm:$0xf]
    %v477 = vld [vmem:[#allocation2 + $0x108] sm:$0xf]
    %v478 = vld [vmem:[#allocation2 + $0x10c] sm:$0xf]
    %v479 = vld [vmem:[#allocation2 + $0x110] sm:$0xf]
    %v480 = vld [vmem:[#allocation2 + $0x114] sm:$0xf]
    %v481 = vld [vmem:[#allocation2 + $0x118] sm:$0xf]
    %v482 = vld [vmem:[#allocation2 + $0x11c] sm:$0xf]
    %v483 = vld [vmem:[#allocation2 + $0x120] sm:$0xf]
    %v484 = vld [vmem:[#allocation2 + $0x124] sm:$0xf]
    %v485 = vld [vmem:[#allocation2 + $0x128] sm:$0xf]
    %v486 = vld [vmem:[#allocation2 + $0x12c] sm:$0xf]
    %v487 = vld [vmem:[#allocation2 + $0x130] sm:$0xf]
    %v488 = vld [vmem:[#allocation2 + $0x134] sm:$0xf]
    %v489 = vld [vmem:[#allocation2 + $0x138] sm:$0xf]
    %v490 = vld [vmem:[#allocation2 + $0x13c] sm:$0xf]
    %v491 = vld [vmem:[#allocation2 + $0x140] sm:$0xf]
    %v492 = vld [vmem:[#allocation2 + $0x144] sm:$0xf]
    %v493 = vld [vmem:[#allocation2 + $0x148] sm:$0xf]
    %v494 = vld [vmem:[#allocation2 + $0x14c] sm:$0xf]
    %v495 = vld [vmem:[#allocation2 + $0x150] sm:$0xf]
    %v496 = vld [vmem:[#allocation2 + $0x154] sm:$0xf]
    %v497 = vld [vmem:[#allocation2 + $0x158] sm:$0xf]
    %v498 = vld [vmem:[#allocation2 + $0x15c] sm:$0xf]
    %v499 = vld [vmem:[#allocation2 + $0x160] sm:$0xf]
    %v500 = vld [vmem:[#allocation2 + $0x164] sm:$0xf]
    %v501 = vld [vmem:[#allocation2 + $0x168] sm:$0xf]
    %v502 = vld [vmem:[#allocation2 + $0x16c] sm:$0xf]
    %v503 = vld [vmem:[#allocation2 + $0x170] sm:$0xf]
    %v504 = vld [vmem:[#allocation2 + $0x174] sm:$0xf]
    %v505 = vld [vmem:[#allocation2 + $0x178] sm:$0xf]
    %v506 = vld [vmem:[#allocation2 + $0x17c] sm:$0xf]
    %v523 = vunpack.c.l.b16 %v491
    %v524 = vunpack.c.l.b16 %v492
    %v525 = vunpack.c.l.b16 %v493
    %v526 = vunpack.c.l.b16 %v494
    %v527 = vunpack.c.l.b16 %v495
    %v528 = vunpack.c.l.b16 %v496
    %v529 = vunpack.c.l.b16 %v497
    %v530 = vunpack.c.l.b16 %v498
    %v531 = vunpack.c.l.b16 %v499
    %v532 = vunpack.c.l.b16 %v500
    %v533 = vunpack.c.l.b16 %v501
    %v534 = vunpack.c.l.b16 %v502
    %v535 = vunpack.c.l.b16 %v503
    %v536 = vunpack.c.l.b16 %v504
    %v537 = vunpack.c.l.b16 %v505
    %v538 = vunpack.c.l.b16 %v506
    %v539 = vpack.c.b16 %v524, %v523
    %v540 = vpack.c.b16 %v526, %v525
    %v541 = vpack.c.b16 %v528, %v527
    %v542 = vpack.c.b16 %v530, %v529
    %v543 = vpack.c.b16 %v532, %v531
    %v544 = vpack.c.b16 %v534, %v533
    %v545 = vpack.c.b16 %v536, %v535
    %v546 = vpack.c.b16 %v538, %v537
    %555 = vmatprep.subr.bf16.mxu0 0
    %556 = vmatpush1.bf16.msra.mxu0 %v539
    %557 = vmatprep.subr.bf16.mxu0 0
    %558 = vmatpush1.bf16.msra.mxu0 %v540
    %559 = vmatprep.subr.bf16.mxu0 0
    %560 = vmatpush1.bf16.msra.mxu0 %v541
    %561 = vmatprep.subr.bf16.mxu0 0
    %562 = vmatpush1.bf16.msra.mxu0 %v542
    %563 = vmatprep.subr.bf16.mxu0 0
    %564 = vmatpush1.bf16.msra.mxu0 %v543
    %565 = vmatprep.subr.bf16.mxu0 0
    %566 = vmatpush1.bf16.msra.mxu0 %v544
    %567 = vmatprep.subr.bf16.mxu0 0
    %568 = vmatpush1.bf16.msra.mxu0 %v545
    %569 = vmatprep.subr.bf16.mxu0 0
    %570 = vmatpush1.bf16.msra.mxu0 %v546
    %571 = vmatprep.subr.bf16.mxu0 0
    %572 = vmatpush1.bf16.msra.mxu0 0
    %573 = vmatprep.subr.bf16.mxu0 0
    %574 = vmatpush1.bf16.msra.mxu0 0
    %575 = vmatprep.subr.bf16.mxu0 0
    %576 = vmatpush1.bf16.msra.mxu0 0
    %577 = vmatprep.subr.bf16.mxu0 0
    %578 = vmatpush1.bf16.msra.mxu0 0
    %579 = vmatprep.subr.bf16.mxu0 0
    %580 = vmatpush1.bf16.msra.mxu0 0
    %581 = vmatprep.subr.bf16.mxu0 0
    %582 = vmatpush1.bf16.msra.mxu0 0
    %583 = vmatprep.subr.bf16.mxu0 0
    %584 = vmatpush1.bf16.msra.mxu0 0
    %585 = vmatprep.subr.bf16.mxu0 0
    %586 = vmatpush1.bf16.msra.mxu0 0
    %587 = vmatprep.mubr.bf16.mxu0 0
    %588 = vmatmul.mubr.bf16.gmra.mrb[0].mxu0 %v474
    %v589 = vpop.f32.mrb[0].mxu0
    %v590 = vadd.f32 0.0, %v589
    %v591 = vpop.f32.mrb[0].mxu0
    %v592 = vpop.f32.mrb[0].mxu0
    %v593 = vpop.f32.mrb[0].mxu0
    %594 = vdwg.mxu0
    %v611 = vunpack.c.l.b16 %v475
    %v612 = vunpack.c.l.b16 %v476
    %v613 = vunpack.c.l.b16 %v477
    %v614 = vunpack.c.l.b16 %v478
    %v615 = vunpack.c.l.b16 %v479
    %v616 = vunpack.c.l.b16 %v480
    %v617 = vunpack.c.l.b16 %v481
    %v618 = vunpack.c.l.b16 %v482
    %v619 = vunpack.c.l.b16 %v483
    %v620 = vunpack.c.l.b16 %v484
    %v621 = vunpack.c.l.b16 %v485
    %v622 = vunpack.c.l.b16 %v486
    %v623 = vunpack.c.l.b16 %v487
    %v624 = vunpack.c.l.b16 %v488
    %v625 = vunpack.c.l.b16 %v489
    %v626 = vunpack.c.l.b16 %v490
    %v627 = vpack.c.b16 %v612, %v611
    %v628 = vpack.c.b16 %v614, %v613
    %v629 = vpack.c.b16 %v616, %v615
    %v630 = vpack.c.b16 %v618, %v617
    %v631 = vpack.c.b16 %v620, %v619
    %v632 = vpack.c.b16 %v622, %v621
    %v633 = vpack.c.b16 %v624, %v623
    %v634 = vpack.c.b16 %v626, %v625
    %643 = vmatprep.subr.bf16.mxu0 0
    %644 = vmatpush1.bf16.msra.mxu0 %v627
    %645 = vmatprep.subr.bf16.mxu0 0
    %646 = vmatpush1.bf16.msra.mxu0 %v628
    %647 = vmatprep.subr.bf16.mxu0 0
    %648 = vmatpush1.bf16.msra.mxu0 %v629
    %649 = vmatprep.subr.bf16.mxu0 0
    %650 = vmatpush1.bf16.msra.mxu0 %v630
    %651 = vmatprep.subr.bf16.mxu0 0
    %652 = vmatpush1.bf16.msra.mxu0 %v631
    %653 = vmatprep.subr.bf16.mxu0 0
    %654 = vmatpush1.bf16.msra.mxu0 %v632
    %655 = vmatprep.subr.bf16.mxu0 0
    %656 = vmatpush1.bf16.msra.mxu0 %v633
    %657 = vmatprep.subr.bf16.mxu0 0
    %658 = vmatpush1.bf16.msra.mxu0 %v634
    %659 = vmatprep.subr.bf16.mxu0 0
    %660 = vmatpush1.bf16.msra.mxu0 0
    %661 = vmatprep.subr.bf16.mxu0 0
    %662 = vmatpush1.bf16.msra.mxu0 0
    %663 = vmatprep.subr.bf16.mxu0 0
    %664 = vmatpush1.bf16.msra.mxu0 0
    %665 = vmatprep.subr.bf16.mxu0 0
    %666 = vmatpush1.bf16.msra.mxu0 0
    %667 = vmatprep.subr.bf16.mxu0 0
    %668 = vmatpush1.bf16.msra.mxu0 0
    %669 = vmatprep.subr.bf16.mxu0 0
    %670 = vmatpush1.bf16.msra.mxu0 0
    %671 = vmatprep.subr.bf16.mxu0 0
    %672 = vmatpush1.bf16.msra.mxu0 0
    %673 = vmatprep.subr.bf16.mxu0 0
    %674 = vmatpush1.bf16.msra.mxu0 0
    %675 = vmatprep.mubr.bf16.mxu0 0
    %676 = vmatmul.mubr.bf16.gmra.mrb[0].mxu0 %v252
    %v677 = vpop.f32.mrb[0].mxu0
    %v678 = vadd.f32 %v590, %v677
    %v679 = vpop.f32.mrb[0].mxu0
    %v680 = vpop.f32.mrb[0].mxu0
    %v681 = vpop.f32.mrb[0].mxu0
    %682 = vdwg.mxu0
    %v683 = vld [vmem:[%s2 + $0x4] sm:$0x1]
    %v684 = vlaneseq
    %v685 = vshrl.u32 %v684, 7
    %v686 = vsub.s32 0, %v685
    %v687 = vrot.slane %v683, %v686
    %v688 = vadd.f32 %v678, %v687
    %689 = vst [vmem:[%s3] sm:$0xff] %v688
    // Predicated region
    $region18: #{forward.1} parent=1 // pred_check
      _
    $region19: #{forward.1} parent=1 // pred_check_branch
      %691 = sbr.rel (0) target = $region21
    $region20: #{forward.1} parent=1 // pred_region
      _
    $region21: #{forward.1} parent=1 // pred_fallthru
      _
    // Predicated region
    $region22: #{forward.1} parent=1 // pred_check
      _
    $region23: #{forward.1} parent=1 // pred_check_branch
      %693 = sbr.rel (0) target = $region25
    $region24: #{forward.1} parent=1 // pred_region
      _
    $region25: #{forward.1} parent=1 // pred_fallthru
      _
    %694 = vsyncpa [#allocation3], 1

</llo_original>
